<compile_context>
chip_gen: v7x
topology: tpu7x:2x2x1
jax: 0.10.0
libtpu: 0.0.40
codegen_flags: <defaults>
</compile_context>

<pallas_src>
import functools
import math

import jax
import jax.numpy as jnp
from jax import lax
from jax.experimental import pallas as pl
from jax.experimental.pallas import tpu as pltpu

# dropout probabilities (globals `dropout1`/`dropout2` in the original script)
DROPOUT1 = 0.2
DROPOUT2 = 0.5

LANE = 128          # TPU lane width: pad feature dims to multiples of this
DEFAULT_TILE_M = 128


def _round_up(n, m):
    return ((n + m - 1) // m) * m


def _uniform_01(shape, seed, salt, tile_m):
    """Per-element U(0,1) from a counter hash (pure VPU integer ops, no EUP, no
    Mosaic-only PRNG primitives, so it also runs under interpret mode)."""
    rows = lax.broadcasted_iota(jnp.int32, shape, 0).astype(jnp.uint32)
    cols = lax.broadcasted_iota(jnp.int32, shape, 1).astype(jnp.uint32)
    row0 = (pl.program_id(0) * tile_m).astype(jnp.uint32)        # global row offset
    idx = (rows + row0) * jnp.uint32(shape[1]) + cols            # unique element id

    x = idx ^ (seed.astype(jnp.uint32) * jnp.uint32(0x9E3779B9))
    x = x ^ jnp.uint32((salt * 0xA511E9B3) & 0xFFFFFFFF)
    # murmur3-style finalizer
    x = x ^ (x >> 16)
    x = x * jnp.uint32(0x85EBCA6B)
    x = x ^ (x >> 13)
    x = x * jnp.uint32(0xC2B2AE35)
    x = x ^ (x >> 16)

    # top 24 bits -> exact float32 in [0, 1)
    u24 = (x >> 8).astype(jnp.int32)
    return u24.astype(jnp.float32) * (1.0 / 16777216.0)


def _apply_dropout(h, p, seed, salt, tile_m):
    """In-kernel equivalent of dropout_layer(X, p) from the module.

    The module keeps an element iff  N(0,1) sample > p  (keep prob = 1 - Phi(p))
    and rescales by 1/(1-p).  We reproduce exactly that distribution with a
    uniform draw: keep iff U(0,1) > Phi(p)."""
    assert 0.0 <= p <= 1.0
    if p == 0.0:
        return h
    if p == 1.0:
        return jnp.zeros_like(h)
    phi_p = 0.5 * (1.0 + math.erf(p / math.sqrt(2.0)))   # static Python float
    scale = 1.0 / (1.0 - p)
    u = _uniform_01(h.shape, seed, salt, tile_m)
    # scale folded into the select: one where + one mul, no mask cast
    return jnp.where(u > phi_p, h * scale, 0.0)


def net_kernel(seed_ref,                                   # scalar-prefetch (SMEM)
               x_ref, w1_ref, b1_ref, w2_ref, b2_ref, w3_ref, b3_ref,
               out_ref,
               *, training, p1, p2, tile_m):
    seed = seed_ref[0]
    x = x_ref[...]                                         # (tile_m, num_inputs) f32

    # lin1 + ReLU (+ dropout1)
    h1 = jnp.dot(x.astype(jnp.bfloat16), w1_ref[...],
                 preferred_element_type=jnp.float32) + b1_ref[...]
    h1 = jnp.maximum(h1, 0.0)
    if training:
        h1 = _apply_dropout(h1, p1, seed, salt=1, tile_m=tile_m)

    # lin2 + ReLU (+ dropout2)
    h2 = jnp.dot(h1.astype(jnp.bfloat16), w2_ref[...],
                 preferred_element_type=jnp.float32) + b2_ref[...]
    h2 = jnp.maximum(h2, 0.0)
    if training:
        h2 = _apply_dropout(h2, p2, seed, salt=2, tile_m=tile_m)

    # lin3 (no activation)
    out = jnp.dot(h2.astype(jnp.bfloat16), w3_ref[...],
                  preferred_element_type=jnp.float32) + b3_ref[...]
    out_ref[...] = out.astype(out_ref.dtype)


def prepare_params(params):
    """One-time prep: pad hidden/output feature dims to 128-lane multiples
    (padded rows/cols are zero so results are unchanged) and cast weights to bf16."""
    w1, b1, w2, b2, w3, b3 = params
    num_inputs, h1 = w1.shape
    _, h2 = w2.shape
    _, num_out = w3.shape
    h1p, h2p, nop = _round_up(h1, LANE), _round_up(h2, LANE), _round_up(num_out, LANE)

    def pad_w(w, rows, cols):
        r, c = w.shape
        return jnp.pad(w, ((0, rows - r), (0, cols - c))).astype(jnp.bfloat16)

    def pad_b(b, cols):
        return jnp.pad(b, ((0, 0), (0, cols - b.shape[1]))).astype(jnp.float32)

    return (pad_w(w1, num_inputs, h1p), pad_b(b1, h1p),
            pad_w(w2, h1p, h2p),        pad_b(b2, h2p),
            pad_w(w3, h2p, nop),        pad_b(b3, nop))


def net_forward(x, padded_params, *, num_inputs, num_outputs,
                training=True, seed=0, tile_m=DEFAULT_TILE_M):
    """Forward pass of Net.  `x` may have any leading shape; it is flattened to
    (-1, num_inputs) exactly like X.reshape((-1, num_inputs)) in the module."""
    w1, b1, w2, b2, w3, b3 = padded_params
    x2d = x.reshape((-1, num_inputs)).astype(jnp.float32)
    batch = x2d.shape[0]

    # batch tiling: at most tile_m rows per grid step, sublane (8) aligned
    tile_m = min(tile_m, _round_up(batch, 8))
    batch_pad = _round_up(batch, tile_m)
    if batch_pad != batch:
        x2d = jnp.pad(x2d, ((0, batch_pad - batch), (0, 0)))

    nop = w3.shape[1]                     # padded (lane-dense) output width
    grid = (batch_pad // tile_m,)
    seed_arr = jnp.array([seed], dtype=jnp.int32)

    def const_spec(shape):                # whole-array block, resident across steps
        nd = len(shape)
        return pl.BlockSpec(shape, lambda i, seed_ref, _nd=nd: (0,) * _nd)

    kernel = functools.partial(net_kernel, training=training,
                               p1=DROPOUT1, p2=DROPOUT2, tile_m=tile_m)

    out_pad = pl.pallas_call(
        kernel,
        out_shape=jax.ShapeDtypeStruct((batch_pad, nop), jnp.float32),
        grid_spec=pltpu.PrefetchScalarGridSpec(
            num_scalar_prefetch=1,
            grid=grid,
            in_specs=[
                pl.BlockSpec((tile_m, num_inputs), lambda i, seed_ref: (i, 0)),
                const_spec(w1.shape), const_spec(b1.shape),
                const_spec(w2.shape), const_spec(b2.shape),
                const_spec(w3.shape), const_spec(b3.shape),
            ],
            out_specs=pl.BlockSpec((tile_m, nop), lambda i, seed_ref: (i, 0)),
        ),
        compiler_params=pltpu.CompilerParams(
            dimension_semantics=("parallel",),          # shard batch tiles over TCs (v7x)
            vmem_limit_bytes=32 * 1024 * 1024),
    )(seed_arr, x2d, w1, b1, w2, b2, w3, b3)

    return out_pad[:batch, :num_outputs]


def init_params(key, num_inputs, num_outputs, num_hiddens1, num_hiddens2):
    """Deterministic nn.Linear-style init; weights stored as (in, out), f32."""
    def linear(key, fan_in, fan_out):
        kw, kb = jax.random.split(key)
        bound = 1.0 / jnp.sqrt(fan_in)
        w = jax.random.uniform(kw, (fan_in, fan_out), jnp.float32, -bound, bound)
        b = jax.random.uniform(kb, (1, fan_out), jnp.float32, -bound, bound)
        return w, b

    k1, k2, k3 = jax.random.split(key, 3)
    w1, b1 = linear(k1, num_inputs, num_hiddens1)
    w2, b2 = linear(k2, num_hiddens1, num_hiddens2)
    w3, b3 = linear(k3, num_hiddens2, num_outputs)
    return (w1, b1, w2, b2, w3, b3)


def _reference_eval(x, padded_params, num_inputs, num_outputs):
    """Pure-JAX eval-mode reference (same bf16/f32 mixed precision)."""
    w1, b1, w2, b2, w3, b3 = padded_params
    x2d = x.reshape((-1, num_inputs)).astype(jnp.float32)
    h1 = jnp.maximum(jnp.dot(x2d.astype(jnp.bfloat16), w1,
                             preferred_element_type=jnp.float32) + b1, 0.0)
    h2 = jnp.maximum(jnp.dot(h1.astype(jnp.bfloat16), w2,
                             preferred_element_type=jnp.float32) + b2, 0.0)
    out = jnp.dot(h2.astype(jnp.bfloat16), w3,
                  preferred_element_type=jnp.float32) + b3
    return out[:, :num_outputs]


if __name__ == "__main__":
    # Small shapes consistent with the module's forward:
    # X of shape (batch=8, 4, 16) -> reshape((-1, num_inputs=64))
    num_inputs, num_outputs = 64, 16
    num_hiddens1, num_hiddens2 = 32, 32
    batch = 8

    key = jax.random.PRNGKey(0)
    kx, kp = jax.random.split(key)
    x = jax.random.normal(kx, (batch, 4, 16), dtype=jnp.float32)
    raw_params = init_params(kp, num_inputs, num_outputs, num_hiddens1, num_hiddens2)
    params = prepare_params(raw_params)

    # training mode (dropout active)
    out = net_forward(x, params, num_inputs=num_inputs, num_outputs=num_outputs,
                      training=True, seed=1234)
    out = jax.block_until_ready(out)
    assert out.shape == (batch, num_outputs)
    assert bool(jnp.all(jnp.isfinite(out)))

    # eval mode (no dropout) — compare against a pure-JAX reference
    out_eval = jax.block_until_ready(
        net_forward(x, params, num_inputs=num_inputs, num_outputs=num_outputs,
                    training=False))
    ref_eval = jax.block_until_ready(
        _reference_eval(x, params, num_inputs, num_outputs))
    assert out_eval.shape == (batch, num_outputs)
    assert bool(jnp.allclose(out_eval, ref_eval, rtol=2e-2, atol=2e-2))

    print("KERNEL_OK")
</pallas_src>

<mosaic_0001>
module attributes {stable_mosaic.version = 11 : i64} {
  func.func @net_kernel(%arg0: i32, %arg1: memref<1xi32, #tpu.memory_space<smem>>, %arg2: memref<8x64xf32, #tpu.memory_space<vmem>>, %arg3: memref<64x128xbf16, #tpu.memory_space<vmem>>, %arg4: memref<1x128xf32, #tpu.memory_space<vmem>>, %arg5: memref<128x128xbf16, #tpu.memory_space<vmem>>, %arg6: memref<1x128xf32, #tpu.memory_space<vmem>>, %arg7: memref<128x128xbf16, #tpu.memory_space<vmem>>, %arg8: memref<1x128xf32, #tpu.memory_space<vmem>>, %arg9: memref<8x128xf32, #tpu.memory_space<vmem>>) attributes {dimension_semantics = [#tpu.dimension_semantics<parallel>], iteration_bounds = array<i64: 1>, scalar_prefetch = 1 : i64, scratch_operands = 0 : i64, tpu.core_type = #tpu.core_type<tc>, window_params = [{transform_indices = @transform_0, window_bounds = array<i64: 8, 64>}, {pipeline_mode = #tpu.pipeline_mode<synchronous>, transform_indices = @transform_1, window_bounds = array<i64: 64, 128>}, {pipeline_mode = #tpu.pipeline_mode<synchronous>, transform_indices = @transform_2, window_bounds = array<i64: 1, 128>}, {pipeline_mode = #tpu.pipeline_mode<synchronous>, transform_indices = @transform_3, window_bounds = array<i64: 128, 128>}, {pipeline_mode = #tpu.pipeline_mode<synchronous>, transform_indices = @transform_4, window_bounds = array<i64: 1, 128>}, {pipeline_mode = #tpu.pipeline_mode<synchronous>, transform_indices = @transform_5, window_bounds = array<i64: 128, 128>}, {pipeline_mode = #tpu.pipeline_mode<synchronous>, transform_indices = @transform_6, window_bounds = array<i64: 1, 128>}, {transform_indices = @transform_7, window_bounds = array<i64: 8, 128>}]} {
    %c0 = arith.constant 0 : index
    %0 = memref.load %arg1[%c0] : memref<1xi32, #tpu.memory_space<smem>>
    %c0_0 = arith.constant 0 : index
    %c0_1 = arith.constant 0 : index
    %1 = vector.load %arg2[%c0_0, %c0_1] : memref<8x64xf32, #tpu.memory_space<vmem>>, vector<8x64xf32>
    %2 = arith.truncf %1 : vector<8x64xf32> to vector<8x64xbf16>
    %c0_2 = arith.constant 0 : index
    %c0_3 = arith.constant 0 : index
    %3 = vector.load %arg3[%c0_2, %c0_3] : memref<64x128xbf16, #tpu.memory_space<vmem>>, vector<64x128xbf16>
    %cst = arith.constant dense<0.000000e+00> : vector<8x128xf32>
    %4 = tpu.matmul %2, %3, %cst {dimension_numbers = #tpu.dot_dimension_numbers<[1], [0], [0], [1], [0, 0, 1, 1], [], []>} : vector<8x64xbf16>, vector<64x128xbf16>, vector<8x128xf32> -> vector<8x128xf32>
    %c0_4 = arith.constant 0 : index
    %c0_5 = arith.constant 0 : index
    %5 = vector.load %arg4[%c0_4, %c0_5] : memref<1x128xf32, #tpu.memory_space<vmem>>, vector<1x128xf32>
    %6 = vector.broadcast %5 : vector<1x128xf32> to vector<8x128xf32>
    %7 = arith.addf %4, %6 : vector<8x128xf32>
    %cst_6 = arith.constant 0.000000e+00 : f32
    %8 = vector.broadcast %cst_6 : f32 to vector<8x128xf32>
    %9 = arith.maximumf %7, %8 : vector<8x128xf32>
    %10 = tpu.iota {dimensions = array<i32: 0>} : vector<8x128xi32>
    %11 = tpu.iota {dimensions = array<i32: 1>} : vector<8x128xi32>
    %c8_i32 = arith.constant 8 : i32
    %12 = arith.muli %arg0, %c8_i32 : i32
    %13 = vector.broadcast %12 : i32 to vector<8x128xi32>
    %14 = arith.addi %10, %13 : vector<8x128xi32>
    %c128_i32 = arith.constant 128 : i32
    %15 = vector.broadcast %c128_i32 : i32 to vector<8x128xi32>
    %16 = arith.muli %14, %15 : vector<8x128xi32>
    %17 = arith.addi %16, %11 : vector<8x128xi32>
    %c-1640531527_i32 = arith.constant -1640531527 : i32
    %18 = arith.muli %0, %c-1640531527_i32 : i32
    %19 = vector.broadcast %18 : i32 to vector<8x128xi32>
    %20 = arith.xori %17, %19 : vector<8x128xi32>
    %c-1525552717_i32 = arith.constant -1525552717 : i32
    %21 = vector.broadcast %c-1525552717_i32 : i32 to vector<8x128xi32>
    %22 = arith.xori %20, %21 : vector<8x128xi32>
    %c16_i32 = arith.constant 16 : i32
    %23 = vector.broadcast %c16_i32 : i32 to vector<8x128xi32>
    %24 = arith.shrui %22, %23 : vector<8x128xi32>
    %25 = arith.xori %22, %24 : vector<8x128xi32>
    %c-2048144789_i32 = arith.constant -2048144789 : i32
    %26 = vector.broadcast %c-2048144789_i32 : i32 to vector<8x128xi32>
    %27 = arith.muli %25, %26 : vector<8x128xi32>
    %c13_i32 = arith.constant 13 : i32
    %28 = vector.broadcast %c13_i32 : i32 to vector<8x128xi32>
    %29 = arith.shrui %27, %28 : vector<8x128xi32>
    %30 = arith.xori %27, %29 : vector<8x128xi32>
    %c-1028477387_i32 = arith.constant -1028477387 : i32
    %31 = vector.broadcast %c-1028477387_i32 : i32 to vector<8x128xi32>
    %32 = arith.muli %30, %31 : vector<8x128xi32>
    %c16_i32_7 = arith.constant 16 : i32
    %33 = vector.broadcast %c16_i32_7 : i32 to vector<8x128xi32>
    %34 = arith.shrui %32, %33 : vector<8x128xi32>
    %35 = arith.xori %32, %34 : vector<8x128xi32>
    %c8_i32_8 = arith.constant 8 : i32
    %36 = vector.broadcast %c8_i32_8 : i32 to vector<8x128xi32>
    %37 = arith.shrui %35, %36 : vector<8x128xi32>
    %38 = arith.sitofp %37 : vector<8x128xi32> to vector<8x128xf32>
    %cst_9 = arith.constant 5.96046448E-8 : f32
    %39 = vector.broadcast %cst_9 : f32 to vector<8x128xf32>
    %40 = arith.mulf %38, %39 : vector<8x128xf32>
    %cst_10 = arith.constant 0.579259694 : f32
    %41 = vector.broadcast %cst_10 : f32 to vector<8x128xf32>
    %42 = arith.cmpf ogt, %40, %41 : vector<8x128xf32>
    %cst_11 = arith.constant 1.250000e+00 : f32
    %43 = vector.broadcast %cst_11 : f32 to vector<8x128xf32>
    %44 = arith.mulf %9, %43 : vector<8x128xf32>
    %cst_12 = arith.constant 0.000000e+00 : f32
    %45 = vector.broadcast %cst_12 : f32 to vector<8x128xf32>
    %46 = arith.select %42, %44, %45 : vector<8x128xi1>, vector<8x128xf32>
    %47 = arith.truncf %46 : vector<8x128xf32> to vector<8x128xbf16>
    %c0_13 = arith.constant 0 : index
    %c0_14 = arith.constant 0 : index
    %48 = vector.load %arg5[%c0_13, %c0_14] : memref<128x128xbf16, #tpu.memory_space<vmem>>, vector<128x128xbf16>
    %cst_15 = arith.constant dense<0.000000e+00> : vector<8x128xf32>
    %49 = tpu.matmul %47, %48, %cst_15 {dimension_numbers = #tpu.dot_dimension_numbers<[1], [0], [0], [1], [0, 0, 1, 1], [], []>} : vector<8x128xbf16>, vector<128x128xbf16>, vector<8x128xf32> -> vector<8x128xf32>
    %c0_16 = arith.constant 0 : index
    %c0_17 = arith.constant 0 : index
    %50 = vector.load %arg6[%c0_16, %c0_17] : memref<1x128xf32, #tpu.memory_space<vmem>>, vector<1x128xf32>
    %51 = vector.broadcast %50 : vector<1x128xf32> to vector<8x128xf32>
    %52 = arith.addf %49, %51 : vector<8x128xf32>
    %cst_18 = arith.constant 0.000000e+00 : f32
    %53 = vector.broadcast %cst_18 : f32 to vector<8x128xf32>
    %54 = arith.maximumf %52, %53 : vector<8x128xf32>
    %55 = tpu.iota {dimensions = array<i32: 0>} : vector<8x128xi32>
    %56 = tpu.iota {dimensions = array<i32: 1>} : vector<8x128xi32>
    %c8_i32_19 = arith.constant 8 : i32
    %57 = arith.muli %arg0, %c8_i32_19 : i32
    %58 = vector.broadcast %57 : i32 to vector<8x128xi32>
    %59 = arith.addi %55, %58 : vector<8x128xi32>
    %c128_i32_20 = arith.constant 128 : i32
    %60 = vector.broadcast %c128_i32_20 : i32 to vector<8x128xi32>
    %61 = arith.muli %59, %60 : vector<8x128xi32>
    %62 = arith.addi %61, %56 : vector<8x128xi32>
    %c-1640531527_i32_21 = arith.constant -1640531527 : i32
    %63 = arith.muli %0, %c-1640531527_i32_21 : i32
    %64 = vector.broadcast %63 : i32 to vector<8x128xi32>
    %65 = arith.xori %62, %64 : vector<8x128xi32>
    %c1243861862_i32 = arith.constant 1243861862 : i32
    %66 = vector.broadcast %c1243861862_i32 : i32 to vector<8x128xi32>
    %67 = arith.xori %65, %66 : vector<8x128xi32>
    %c16_i32_22 = arith.constant 16 : i32
    %68 = vector.broadcast %c16_i32_22 : i32 to vector<8x128xi32>
    %69 = arith.shrui %67, %68 : vector<8x128xi32>
    %70 = arith.xori %67, %69 : vector<8x128xi32>
    %c-2048144789_i32_23 = arith.constant -2048144789 : i32
    %71 = vector.broadcast %c-2048144789_i32_23 : i32 to vector<8x128xi32>
    %72 = arith.muli %70, %71 : vector<8x128xi32>
    %c13_i32_24 = arith.constant 13 : i32
    %73 = vector.broadcast %c13_i32_24 : i32 to vector<8x128xi32>
    %74 = arith.shrui %72, %73 : vector<8x128xi32>
    %75 = arith.xori %72, %74 : vector<8x128xi32>
    %c-1028477387_i32_25 = arith.constant -1028477387 : i32
    %76 = vector.broadcast %c-1028477387_i32_25 : i32 to vector<8x128xi32>
    %77 = arith.muli %75, %76 : vector<8x128xi32>
    %c16_i32_26 = arith.constant 16 : i32
    %78 = vector.broadcast %c16_i32_26 : i32 to vector<8x128xi32>
    %79 = arith.shrui %77, %78 : vector<8x128xi32>
    %80 = arith.xori %77, %79 : vector<8x128xi32>
    %c8_i32_27 = arith.constant 8 : i32
    %81 = vector.broadcast %c8_i32_27 : i32 to vector<8x128xi32>
    %82 = arith.shrui %80, %81 : vector<8x128xi32>
    %83 = arith.sitofp %82 : vector<8x128xi32> to vector<8x128xf32>
    %cst_28 = arith.constant 5.96046448E-8 : f32
    %84 = vector.broadcast %cst_28 : f32 to vector<8x128xf32>
    %85 = arith.mulf %83, %84 : vector<8x128xf32>
    %cst_29 = arith.constant 0.691462457 : f32
    %86 = vector.broadcast %cst_29 : f32 to vector<8x128xf32>
    %87 = arith.cmpf ogt, %85, %86 : vector<8x128xf32>
    %cst_30 = arith.constant 2.000000e+00 : f32
    %88 = vector.broadcast %cst_30 : f32 to vector<8x128xf32>
    %89 = arith.mulf %54, %88 : vector<8x128xf32>
    %cst_31 = arith.constant 0.000000e+00 : f32
    %90 = vector.broadcast %cst_31 : f32 to vector<8x128xf32>
    %91 = arith.select %87, %89, %90 : vector<8x128xi1>, vector<8x128xf32>
    %92 = arith.truncf %91 : vector<8x128xf32> to vector<8x128xbf16>
    %c0_32 = arith.constant 0 : index
    %c0_33 = arith.constant 0 : index
    %93 = vector.load %arg7[%c0_32, %c0_33] : memref<128x128xbf16, #tpu.memory_space<vmem>>, vector<128x128xbf16>
    %cst_34 = arith.constant dense<0.000000e+00> : vector<8x128xf32>
    %94 = tpu.matmul %92, %93, %cst_34 {dimension_numbers = #tpu.dot_dimension_numbers<[1], [0], [0], [1], [0, 0, 1, 1], [], []>} : vector<8x128xbf16>, vector<128x128xbf16>, vector<8x128xf32> -> vector<8x128xf32>
    %c0_35 = arith.constant 0 : index
    %c0_36 = arith.constant 0 : index
    %95 = vector.load %arg8[%c0_35, %c0_36] : memref<1x128xf32, #tpu.memory_space<vmem>>, vector<1x128xf32>
    %96 = vector.broadcast %95 : vector<1x128xf32> to vector<8x128xf32>
    %97 = arith.addf %94, %96 : vector<8x128xf32>
    %c0_37 = arith.constant 0 : index
    %c0_38 = arith.constant 0 : index
    %98 = vector.load %arg9[%c0_37, %c0_38] : memref<8x128xf32, #tpu.memory_space<vmem>>, vector<8x128xf32>
    tpu.vector_store %arg9[%c0_37, %c0_38], %97 {strides = array<i32>} : memref<8x128xf32, #tpu.memory_space<vmem>>, vector<8x128xf32>,
    return
  }
  func.func @transform_0(%arg0: i32, %arg1: memref<1xi32, #tpu.memory_space<smem>>) -> (i32, i32) {
    %c0_i32 = arith.constant 0 : i32
    %c0_i32_0 = arith.constant 0 : i32
    return %arg0, %c0_i32 : i32, i32
  }
  func.func @transform_1(%arg0: i32, %arg1: memref<1xi32, #tpu.memory_space<smem>>) -> (i32, i32) {
    %c0_i32 = arith.constant 0 : i32
    %c0_i32_0 = arith.constant 0 : i32
    %c0_i32_1 = arith.constant 0 : i32
    return %c0_i32, %c0_i32_0 : i32, i32
  }
  func.func @transform_2(%arg0: i32, %arg1: memref<1xi32, #tpu.memory_space<smem>>) -> (i32, i32) {
    %c0_i32 = arith.constant 0 : i32
    %c0_i32_0 = arith.constant 0 : i32
    %c0_i32_1 = arith.constant 0 : i32
    return %c0_i32, %c0_i32_0 : i32, i32
  }
  func.func @transform_3(%arg0: i32, %arg1: memref<1xi32, #tpu.memory_space<smem>>) -> (i32, i32) {
    %c0_i32 = arith.constant 0 : i32
    %c0_i32_0 = arith.constant 0 : i32
    %c0_i32_1 = arith.constant 0 : i32
    return %c0_i32, %c0_i32_0 : i32, i32
  }
  func.func @transform_4(%arg0: i32, %arg1: memref<1xi32, #tpu.memory_space<smem>>) -> (i32, i32) {
    %c0_i32 = arith.constant 0 : i32
    %c0_i32_0 = arith.constant 0 : i32
    %c0_i32_1 = arith.constant 0 : i32
    return %c0_i32, %c0_i32_0 : i32, i32
  }
  func.func @transform_5(%arg0: i32, %arg1: memref<1xi32, #tpu.memory_space<smem>>) -> (i32, i32) {
    %c0_i32 = arith.constant 0 : i32
    %c0_i32_0 = arith.constant 0 : i32
    %c0_i32_1 = arith.constant 0 : i32
    return %c0_i32, %c0_i32_0 : i32, i32
  }
  func.func @transform_6(%arg0: i32, %arg1: memref<1xi32, #tpu.memory_space<smem>>) -> (i32, i32) {
    %c0_i32 = arith.constant 0 : i32
    %c0_i32_0 = arith.constant 0 : i32
    %c0_i32_1 = arith.constant 0 : i32
    return %c0_i32, %c0_i32_0 : i32, i32
  }
  func.func @transform_7(%arg0: i32, %arg1: memref<1xi32, #tpu.memory_space<smem>>) -> (i32, i32) {
    %c0_i32 = arith.constant 0 : i32
    %c0_i32_0 = arith.constant 0 : i32
    return %arg0, %c0_i32 : i32, i32
  }
}

</mosaic_0001>

<llo_original>
// kernel: tpu_custom_call.1
$region0: #{tpu_custom_call.1}
  #allocation0 [shape = 'u32[]', space=smem, size = 0x4, offset = 0x4, fixed_abs, tag = 'smem constant byte address 0x4 - core index']
  #allocation1 [shape = 'u32[144,128]{1,0:T(1,128)}', space=vmem, size = 0x12000, scoped, tag = 'internal scratch']
  #allocation2 [shape = 's32[1]{0}', space=sflag, size = 0x4, scoped, tag = 'scoped memory for tpu_custom_call.1']
  #allocation3 [shape = 's32[1]{0:T(128)S(6)}', space=smem, size = 0x200, scoped, tag = 'prefetched SMEM operand 0']
  %s0 = inlined_call_operand.<no memory space> [shape: s32[1], index: 0, kind: input, shape index: {}]
  %s1 = inlined_call_operand.hbm [shape: f32[8,64], index: 1, kind: input, shape index: {}]
  %s2 = inlined_call_operand.hbm [shape: bf16[64,128], index: 2, kind: input, shape index: {}]
  %s3 = inlined_call_operand.vmem [shape: f32[1,128], index: 3, kind: input, shape index: {}]
  %s4 = inlined_call_operand.hbm [shape: bf16[128,128], index: 4, kind: input, shape index: {}]
  %s5 = inlined_call_operand.vmem [shape: f32[1,128], index: 5, kind: input, shape index: {}]
  %s6 = inlined_call_operand.hbm [shape: bf16[128,128], index: 6, kind: input, shape index: {}]
  %s7 = inlined_call_operand.vmem [shape: f32[1,128], index: 7, kind: input, shape index: {}]
  %s8 = inlined_call_operand.hbm [shape: f32[8,128], index: 8, kind: output, shape index: {}]
  %s9 = sld [smem:[#allocation0]]
  $region54: #{tpu_custom_call.1} parent=0
    _
  %s11 = ssub.s32 1, %s9
  %s12 = scalar_select 0, %s11, %s9
  %13 = sst [smem:[#allocation3]] %s0
  $region1: #{tpu_custom_call.1} parent=0
    #allocation4 [shape = 'u8[4096]{0}', space=vmem, size = 0x1000, scoped, tag = 'input window, operand 1, single buffered']
    #allocation5 [shape = 's32[1]{0}', space=sflag, size = 0x4, scoped, tag = 'scoped memory for tpu_custom_call.1']
    #allocation6 [shape = 's32[1]{0}', space=sflag, size = 0x4, scoped, tag = 'scoped memory for tpu_custom_call.1']
    #allocation7 [shape = 'u8[16384]{0}', space=vmem, size = 0x4000, scoped, tag = 'input window, operand 2, single buffered']
    #allocation8 [shape = 's32[1]{0}', space=sflag, size = 0x4, scoped, tag = 'scoped memory for tpu_custom_call.1']
    #allocation9 [shape = 'u8[32768]{0}', space=vmem, size = 0x8000, scoped, tag = 'input window, operand 4, single buffered']
    #allocation10 [shape = 'u8[32768]{0}', space=vmem, size = 0x8000, scoped, tag = 'input window, operand 6, single buffered']
    #allocation11 [shape = 's32[1]{0}', space=sflag, size = 0x4, scoped, tag = 'scoped memory for tpu_custom_call.1']
    #allocation12 [shape = 'u8[4096]{0}', space=vmem, size = 0x1000, scoped, tag = 'output window, operand 0, single buffered']
    %14 = vsyncpa [#allocation5], 0
    %15 = vsyncpa [#allocation8], 0
    %16 = vsyncpa [#allocation11], 0
    %17 = vsyncpa [#allocation6], 0
    // Predicated region
    $region2: #{tpu_custom_call.1} parent=1 // pred_check
      _
    $region3: #{tpu_custom_call.1} parent=1 // pred_check_branch
      %19 = sbr.rel (0) target = $region5
    $region4: #{tpu_custom_call.1} parent=1 // pred_region
      %s21 = ssub.s32 128, 128
      %22 = vsyncadd [#allocation5], %s21
      %s24 = sshll.u32 [#allocation4], 4
      %s25 = int_to_ptr.vmem [resolvable:$true] %s24
      %27 = dma.hbm_to_vmem [thread:$0]  %s1, 128, %s25, [#allocation5]
    $region5: #{tpu_custom_call.1} parent=1 // pred_fallthru
      _
    // Predicated region
    $region6: #{tpu_custom_call.1} parent=1 // pred_check
      _
    $region7: #{tpu_custom_call.1} parent=1 // pred_check_branch
      %29 = sbr.rel (0) target = $region9
    $region8: #{tpu_custom_call.1} parent=1 // pred_region
      %s31 = ssub.s32 512, 512
      %32 = vsyncadd [#allocation8], %s31
      %s33 = sshll.u32 [#allocation7], 4
      %s34 = int_to_ptr.vmem [resolvable:$true] %s33
      %39 = dma.hbm_to_vmem [thread:$0]  %s2, 512, %s34, [#allocation8], 64, 64, 4
    $region9: #{tpu_custom_call.1} parent=1 // pred_fallthru
      _
    // Predicated region
    $region10: #{tpu_custom_call.1} parent=1 // pred_check
      _
    $region11: #{tpu_custom_call.1} parent=1 // pred_check_branch
      %41 = sbr.rel (0) target = $region13
    $region12: #{tpu_custom_call.1} parent=1 // pred_region
      _
    $region13: #{tpu_custom_call.1} parent=1 // pred_fallthru
      _
    // Predicated region
    $region14: #{tpu_custom_call.1} parent=1 // pred_check
      _
    $region15: #{tpu_custom_call.1} parent=1 // pred_check_branch
      %43 = sbr.rel (0) target = $region17
    $region16: #{tpu_custom_call.1} parent=1 // pred_region
      %s45 = ssub.s32 1024, 1024
      %46 = vsyncadd [#allocation8], %s45
      %s47 = sshll.u32 [#allocation9], 4
      %s48 = int_to_ptr.vmem [resolvable:$true] %s47
      %53 = dma.hbm_to_vmem [thread:$0]  %s4, 1024, %s48, [#allocation8], 64, 64, 4
    $region17: #{tpu_custom_call.1} parent=1 // pred_fallthru
      _
    // Predicated region
    $region18: #{tpu_custom_call.1} parent=1 // pred_check
      _
    $region19: #{tpu_custom_call.1} parent=1 // pred_check_branch
      %55 = sbr.rel (0) target = $region21
    $region20: #{tpu_custom_call.1} parent=1 // pred_region
      _
    $region21: #{tpu_custom_call.1} parent=1 // pred_fallthru
      _
    // Predicated region
    $region22: #{tpu_custom_call.1} parent=1 // pred_check
      _
    $region23: #{tpu_custom_call.1} parent=1 // pred_check_branch
      %57 = sbr.rel (0) target = $region25
    $region24: #{tpu_custom_call.1} parent=1 // pred_region
      %s59 = ssub.s32 1024, 1024
      %60 = vsyncadd [#allocation11], %s59
      %s61 = sshll.u32 [#allocation10], 4
      %s62 = int_to_ptr.vmem [resolvable:$true] %s61
      %67 = dma.hbm_to_vmem [thread:$0]  %s6, 1024, %s62, [#allocation11], 64, 64, 4
    $region25: #{tpu_custom_call.1} parent=1 // pred_fallthru
      _
    // Predicated region
    $region26: #{tpu_custom_call.1} parent=1 // pred_check
      _
    $region27: #{tpu_custom_call.1} parent=1 // pred_check_branch
      %69 = sbr.rel (0) target = $region29
    $region28: #{tpu_custom_call.1} parent=1 // pred_region
      _
    $region29: #{tpu_custom_call.1} parent=1 // pred_fallthru
      _
    // Predicated region
    $region30: #{tpu_custom_call.1} parent=1 // pred_check
      _
    $region31: #{tpu_custom_call.1} parent=1 // pred_check_branch
      %71 = sbr.rel (0) target = $region33
    $region32: #{tpu_custom_call.1} parent=1 // pred_region
      %72 = dma.done [#allocation5], 128
    $region33: #{tpu_custom_call.1} parent=1 // pred_fallthru
      _
    // Predicated region
    $region34: #{tpu_custom_call.1} parent=1 // pred_check
      _
    $region35: #{tpu_custom_call.1} parent=1 // pred_check_branch
      %74 = sbr.rel (0) target = $region37
    $region36: #{tpu_custom_call.1} parent=1 // pred_region
      %75 = dma.done [#allocation8], 512
    $region37: #{tpu_custom_call.1} parent=1 // pred_fallthru
      _
    // Predicated region
    $region38: #{tpu_custom_call.1} parent=1 // pred_check
      _
    $region39: #{tpu_custom_call.1} parent=1 // pred_check_branch
      %77 = sbr.rel (0) target = $region41
    $region40: #{tpu_custom_call.1} parent=1 // pred_region
      %78 = dma.done [#allocation8], 1024
    $region41: #{tpu_custom_call.1} parent=1 // pred_fallthru
      _
    // Predicated region
    $region42: #{tpu_custom_call.1} parent=1 // pred_check
      _
    $region43: #{tpu_custom_call.1} parent=1 // pred_check_branch
      %80 = sbr.rel (0) target = $region45
    $region44: #{tpu_custom_call.1} parent=1 // pred_region
      %81 = dma.done [#allocation11], 1024
    $region45: #{tpu_custom_call.1} parent=1 // pred_fallthru
      _
    %s83 = sld [smem:[#allocation3]]
    %v84 = vld [vmem:[#allocation4] sm:$0xff]
    %v85 = vpack.c.bf16 %v84, %v84
    %v86 = vld [vmem:[#allocation7] sm:$0xf]
    %v87 = vld [vmem:[#allocation7 + $0x4] sm:$0xf]
    %v88 = vld [vmem:[#allocation7 + $0x8] sm:$0xf]
    %v89 = vld [vmem:[#allocation7 + $0xc] sm:$0xf]
    %v90 = vld [vmem:[#allocation7 + $0x10] sm:$0xf]
    %v91 = vld [vmem:[#allocation7 + $0x14] sm:$0xf]
    %v92 = vld [vmem:[#allocation7 + $0x18] sm:$0xf]
    %v93 = vld [vmem:[#allocation7 + $0x1c] sm:$0xf]
    %v94 = vld [vmem:[%s3] sm:$0x1]
    %v96 = vlaneseq
    %v97 = vshrl.u32 %v96, 7
    %v98 = vsub.s32 0, %v97
    %v99 = vrot.slane %v94, %v98
    %v109 = vunpack.c.l.b16 %v86
    %v110 = vunpack.c.l.b16 %v87
    %v111 = vunpack.c.l.b16 %v88
    %v112 = vunpack.c.l.b16 %v89
    %v113 = vunpack.c.l.b16 %v90
    %v114 = vunpack.c.l.b16 %v91
    %v115 = vunpack.c.l.b16 %v92
    %v116 = vunpack.c.l.b16 %v93
    %v117 = vpack.c.b16 %v110, %v109
    %v118 = vpack.c.b16 %v112, %v111
    %v119 = vpack.c.b16 %v114, %v113
    %v120 = vpack.c.b16 %v116, %v115
    %vm125 = vcmask 523264
    %v127 = vsel %vm125, %v85, 0
    %129 = vmatprep.subr.bf16.mxu0 0
    %130 = vmatpush1.bf16.msra.mxu0 %v117
    %131 = vmatprep.subr.bf16.mxu0 0
    %132 = vmatpush1.bf16.msra.mxu0 %v118
    %133 = vmatprep.subr.bf16.mxu0 0
    %134 = vmatpush1.bf16.msra.mxu0 %v119
    %135 = vmatprep.subr.bf16.mxu0 0
    %136 = vmatpush1.bf16.msra.mxu0 %v120
    %137 = vmatprep.subr.bf16.mxu0 0
    %138 = vmatpush1.bf16.msra.mxu0 0
    %139 = vmatprep.subr.bf16.mxu0 0
    %140 = vmatpush1.bf16.msra.mxu0 0
    %141 = vmatprep.subr.bf16.mxu0 0
    %142 = vmatpush1.bf16.msra.mxu0 0
    %143 = vmatprep.subr.bf16.mxu0 0
    %144 = vmatpush1.bf16.msra.mxu0 0
    %145 = vmatprep.subr.bf16.mxu0 0
    %146 = vmatpush1.bf16.msra.mxu0 0
    %147 = vmatprep.subr.bf16.mxu0 0
    %148 = vmatpush1.bf16.msra.mxu0 0
    %149 = vmatprep.subr.bf16.mxu0 0
    %150 = vmatpush1.bf16.msra.mxu0 0
    %151 = vmatprep.subr.bf16.mxu0 0
    %152 = vmatpush1.bf16.msra.mxu0 0
    %153 = vmatprep.subr.bf16.mxu0 0
    %154 = vmatpush1.bf16.msra.mxu0 0
    %155 = vmatprep.subr.bf16.mxu0 0
    %156 = vmatpush1.bf16.msra.mxu0 0
    %157 = vmatprep.subr.bf16.mxu0 0
    %158 = vmatpush1.bf16.msra.mxu0 0
    %159 = vmatprep.subr.bf16.mxu0 0
    %160 = vmatpush1.bf16.msra.mxu0 0
    %161 = vmatprep.mubr.bf16.mxu0 0
    %162 = vmatmul.mubr.bf16.gmra.mrb[0].mxu0 %v127
    %v163 = vpop.f32.mrb[0].mxu0
    %v164 = vadd.f32 %v99, %v163
    %v165 = vpop.f32.mrb[0].mxu0
    %v166 = vpop.f32.mrb[0].mxu0
    %v167 = vpop.f32.mrb[0].mxu0
    %168 = vdwg.mxu0
    %v169 = vmax.f32 %v164, 0.0
    %v170 = vlaneseq
    %v171 = vshrl.u32 %v170, 7
    %v172 = vlaneseq
    %v173 = vand.u32 %v172, 127
    %s174 = smul.u32 0, 8
    %v175 = vstv %s174
    %v176 = vadd.s32 %v171, %v175
    %v177 = vmul.u32 %v176, 128
    %v178 = vadd.s32 %v177, %v173
    %s179 = smul.u32 %s83, 2654435769
    %v180 = vstv %s179
    %v181 = vxor.u32 %v178, %v180
    %v182 = vxor.u32 %v181, 2769414579
    %v183 = vshrl.u32 %v182, 16
    %v184 = vxor.u32 %v182, %v183
    %v185 = vmul.u32 %v184, 2246822507
    %v186 = vshrl.u32 %v185, 13
    %v187 = vxor.u32 %v185, %v186
    %v188 = vmul.u32 %v187, 3266489909
    %v189 = vshrl.u32 %v188, 16
    %v190 = vxor.u32 %v188, %v189
    %v191 = vshrl.u32 %v190, 8
    %v192 = vcvt.s32.f32 %v191
    %v193 = vmul.f32 %v192, 5.9604645e-08
    %vm194 = vcmp.gt.f32.partialorder %v193, 0.5792597
    %v195 = vmul.f32 %v169, 1.25
    %v196 = vsel %vm194, %v195, 0.0
    %v197 = vpack.c.bf16 %v196, %v196
    %v198 = vld [vmem:[#allocation9] sm:$0xf]
    %v199 = vld [vmem:[#allocation9 + $0x4] sm:$0xf]
    %v200 = vld [vmem:[#allocation9 + $0x8] sm:$0xf]
    %v201 = vld [vmem:[#allocation9 + $0xc] sm:$0xf]
    %v202 = vld [vmem:[#allocation9 + $0x10] sm:$0xf]
    %v203 = vld [vmem:[#allocation9 + $0x14] sm:$0xf]
    %v204 = vld [vmem:[#allocation9 + $0x18] sm:$0xf]
    %v205 = vld [vmem:[#allocation9 + $0x1c] sm:$0xf]
    %v206 = vld [vmem:[#allocation9 + $0x20] sm:$0xf]
    %v207 = vld [vmem:[#allocation9 + $0x24] sm:$0xf]
    %v208 = vld [vmem:[#allocation9 + $0x28] sm:$0xf]
    %v209 = vld [vmem:[#allocation9 + $0x2c] sm:$0xf]
    %v210 = vld [vmem:[#allocation9 + $0x30] sm:$0xf]
    %v211 = vld [vmem:[#allocation9 + $0x34] sm:$0xf]
    %v212 = vld [vmem:[#allocation9 + $0x38] sm:$0xf]
    %v213 = vld [vmem:[#allocation9 + $0x3c] sm:$0xf]
    %v214 = vld [vmem:[%s5] sm:$0x1]
    %v216 = vlaneseq
    %v217 = vshrl.u32 %v216, 7
    %v218 = vsub.s32 0, %v217
    %v219 = vrot.slane %v214, %v218
    %v237 = vunpack.c.l.b16 %v198
    %v238 = vunpack.c.l.b16 %v199
    %v239 = vunpack.c.l.b16 %v200
    %v240 = vunpack.c.l.b16 %v201
    %v241 = vunpack.c.l.b16 %v202
    %v242 = vunpack.c.l.b16 %v203
    %v243 = vunpack.c.l.b16 %v204
    %v244 = vunpack.c.l.b16 %v205
    %v245 = vunpack.c.l.b16 %v206
    %v246 = vunpack.c.l.b16 %v207
    %v247 = vunpack.c.l.b16 %v208
    %v248 = vunpack.c.l.b16 %v209
    %v249 = vunpack.c.l.b16 %v210
    %v250 = vunpack.c.l.b16 %v211
    %v251 = vunpack.c.l.b16 %v212
    %v252 = vunpack.c.l.b16 %v213
    %v253 = vpack.c.b16 %v238, %v237
    %v254 = vpack.c.b16 %v240, %v239
    %v255 = vpack.c.b16 %v242, %v241
    %v256 = vpack.c.b16 %v244, %v243
    %v257 = vpack.c.b16 %v246, %v245
    %v258 = vpack.c.b16 %v248, %v247
    %v259 = vpack.c.b16 %v250, %v249
    %v260 = vpack.c.b16 %v252, %v251
    %269 = vmatprep.subr.bf16.mxu0 0
    %270 = vmatpush1.bf16.msra.mxu0 %v253
    %271 = vmatprep.subr.bf16.mxu0 0
    %272 = vmatpush1.bf16.msra.mxu0 %v254
    %273 = vmatprep.subr.bf16.mxu0 0
    %274 = vmatpush1.bf16.msra.mxu0 %v255
    %275 = vmatprep.subr.bf16.mxu0 0
    %276 = vmatpush1.bf16.msra.mxu0 %v256
    %277 = vmatprep.subr.bf16.mxu0 0
    %278 = vmatpush1.bf16.msra.mxu0 %v257
    %279 = vmatprep.subr.bf16.mxu0 0
    %280 = vmatpush1.bf16.msra.mxu0 %v258
    %281 = vmatprep.subr.bf16.mxu0 0
    %282 = vmatpush1.bf16.msra.mxu0 %v259
    %283 = vmatprep.subr.bf16.mxu0 0
    %284 = vmatpush1.bf16.msra.mxu0 %v260
    %285 = vmatprep.subr.bf16.mxu0 0
    %286 = vmatpush1.bf16.msra.mxu0 0
    %287 = vmatprep.subr.bf16.mxu0 0
    %288 = vmatpush1.bf16.msra.mxu0 0
    %289 = vmatprep.subr.bf16.mxu0 0
    %290 = vmatpush1.bf16.msra.mxu0 0
    %291 = vmatprep.subr.bf16.mxu0 0
    %292 = vmatpush1.bf16.msra.mxu0 0
    %293 = vmatprep.subr.bf16.mxu0 0
    %294 = vmatpush1.bf16.msra.mxu0 0
    %295 = vmatprep.subr.bf16.mxu0 0
    %296 = vmatpush1.bf16.msra.mxu0 0
    %297 = vmatprep.subr.bf16.mxu0 0
    %298 = vmatpush1.bf16.msra.mxu0 0
    %299 = vmatprep.subr.bf16.mxu0 0
    %300 = vmatpush1.bf16.msra.mxu0 0
    %301 = vmatprep.mubr.bf16.mxu0 0
    %302 = vmatmul.mubr.bf16.gmra.mrb[0].mxu0 %v197
    %v303 = vpop.f32.mrb[0].mxu0
    %v304 = vadd.f32 %v219, %v303
    %v305 = vpop.f32.mrb[0].mxu0
    %v306 = vpop.f32.mrb[0].mxu0
    %v307 = vpop.f32.mrb[0].mxu0
    %308 = vdwg.mxu0
    %v309 = vmax.f32 %v304, 0.0
    %v310 = vxor.u32 %v181, 1243861862
    %v311 = vshrl.u32 %v310, 16
    %v312 = vxor.u32 %v310, %v311
    %v313 = vmul.u32 %v312, 2246822507
    %v314 = vshrl.u32 %v313, 13
    %v315 = vxor.u32 %v313, %v314
    %v316 = vmul.u32 %v315, 3266489909
    %v317 = vshrl.u32 %v316, 16
    %v318 = vxor.u32 %v316, %v317
    %v319 = vshrl.u32 %v318, 8
    %v320 = vcvt.s32.f32 %v319
    %v321 = vmul.f32 %v320, 5.9604645e-08
    %vm322 = vcmp.gt.f32.partialorder %v321, 0.69146246
    %v323 = vmul.f32 %v309, 2.0
    %v324 = vsel %vm322, %v323, 0.0
    %v325 = vpack.c.bf16 %v324, %v324
    %v326 = vld [vmem:[#allocation10] sm:$0xf]
    %v327 = vld [vmem:[#allocation10 + $0x4] sm:$0xf]
    %v328 = vld [vmem:[#allocation10 + $0x8] sm:$0xf]
    %v329 = vld [vmem:[#allocation10 + $0xc] sm:$0xf]
    %v330 = vld [vmem:[#allocation10 + $0x10] sm:$0xf]
    %v331 = vld [vmem:[#allocation10 + $0x14] sm:$0xf]
    %v332 = vld [vmem:[#allocation10 + $0x18] sm:$0xf]
    %v333 = vld [vmem:[#allocation10 + $0x1c] sm:$0xf]
    %v334 = vld [vmem:[#allocation10 + $0x20] sm:$0xf]
    %v335 = vld [vmem:[#allocation10 + $0x24] sm:$0xf]
    %v336 = vld [vmem:[#allocation10 + $0x28] sm:$0xf]
    %v337 = vld [vmem:[#allocation10 + $0x2c] sm:$0xf]
    %v338 = vld [vmem:[#allocation10 + $0x30] sm:$0xf]
    %v339 = vld [vmem:[#allocation10 + $0x34] sm:$0xf]
    %v340 = vld [vmem:[#allocation10 + $0x38] sm:$0xf]
    %v341 = vld [vmem:[#allocation10 + $0x3c] sm:$0xf]
    %v342 = vld [vmem:[%s7] sm:$0x1]
    %v344 = vlaneseq
    %v345 = vshrl.u32 %v344, 7
    %v346 = vsub.s32 0, %v345
    %v347 = vrot.slane %v342, %v346
    %v365 = vunpack.c.l.b16 %v326
    %v366 = vunpack.c.l.b16 %v327
    %v367 = vunpack.c.l.b16 %v328
    %v368 = vunpack.c.l.b16 %v329
    %v369 = vunpack.c.l.b16 %v330
    %v370 = vunpack.c.l.b16 %v331
    %v371 = vunpack.c.l.b16 %v332
    %v372 = vunpack.c.l.b16 %v333
    %v373 = vunpack.c.l.b16 %v334
    %v374 = vunpack.c.l.b16 %v335
    %v375 = vunpack.c.l.b16 %v336
    %v376 = vunpack.c.l.b16 %v337
    %v377 = vunpack.c.l.b16 %v338
    %v378 = vunpack.c.l.b16 %v339
    %v379 = vunpack.c.l.b16 %v340
    %v380 = vunpack.c.l.b16 %v341
    %v381 = vpack.c.b16 %v366, %v365
    %v382 = vpack.c.b16 %v368, %v367
    %v383 = vpack.c.b16 %v370, %v369
    %v384 = vpack.c.b16 %v372, %v371
    %v385 = vpack.c.b16 %v374, %v373
    %v386 = vpack.c.b16 %v376, %v375
    %v387 = vpack.c.b16 %v378, %v377
    %v388 = vpack.c.b16 %v380, %v379
    %397 = vmatprep.subr.bf16.mxu0 0
    %398 = vmatpush1.bf16.msra.mxu0 %v381
    %399 = vmatprep.subr.bf16.mxu0 0
    %400 = vmatpush1.bf16.msra.mxu0 %v382
    %401 = vmatprep.subr.bf16.mxu0 0
    %402 = vmatpush1.bf16.msra.mxu0 %v383
    %403 = vmatprep.subr.bf16.mxu0 0
    %404 = vmatpush1.bf16.msra.mxu0 %v384
    %405 = vmatprep.subr.bf16.mxu0 0
    %406 = vmatpush1.bf16.msra.mxu0 %v385
    %407 = vmatprep.subr.bf16.mxu0 0
    %408 = vmatpush1.bf16.msra.mxu0 %v386
    %409 = vmatprep.subr.bf16.mxu0 0
    %410 = vmatpush1.bf16.msra.mxu0 %v387
    %411 = vmatprep.subr.bf16.mxu0 0
    %412 = vmatpush1.bf16.msra.mxu0 %v388
    %413 = vmatprep.subr.bf16.mxu0 0
    %414 = vmatpush1.bf16.msra.mxu0 0
    %415 = vmatprep.subr.bf16.mxu0 0
    %416 = vmatpush1.bf16.msra.mxu0 0
    %417 = vmatprep.subr.bf16.mxu0 0
    %418 = vmatpush1.bf16.msra.mxu0 0
    %419 = vmatprep.subr.bf16.mxu0 0
    %420 = vmatpush1.bf16.msra.mxu0 0
    %421 = vmatprep.subr.bf16.mxu0 0
    %422 = vmatpush1.bf16.msra.mxu0 0
    %423 = vmatprep.subr.bf16.mxu0 0
    %424 = vmatpush1.bf16.msra.mxu0 0
    %425 = vmatprep.subr.bf16.mxu0 0
    %426 = vmatpush1.bf16.msra.mxu0 0
    %427 = vmatprep.subr.bf16.mxu0 0
    %428 = vmatpush1.bf16.msra.mxu0 0
    %429 = vmatprep.mubr.bf16.mxu0 0
    %430 = vmatmul.mubr.bf16.gmra.mrb[0].mxu0 %v325
    %v431 = vpop.f32.mrb[0].mxu0
    %v432 = vadd.f32 %v347, %v431
    %v433 = vpop.f32.mrb[0].mxu0
    %v434 = vpop.f32.mrb[0].mxu0
    %v435 = vpop.f32.mrb[0].mxu0
    %436 = vdwg.mxu0
    %437 = vst [vmem:[#allocation12] sm:$0xff] %v432
    // Predicated region
    $region46: #{tpu_custom_call.1} parent=1 // pred_check
      _
    $region47: #{tpu_custom_call.1} parent=1 // pred_check_branch
      %439 = sbr.rel (0) target = $region49
    $region48: #{tpu_custom_call.1} parent=1 // pred_region
      %s441 = ssub.s32 128, 128
      %442 = vsyncadd [#allocation6], %s441
      %s444 = sshll.u32 [#allocation12], 4
      %s445 = int_to_ptr.vmem [resolvable:$true] %s444
      %447 = dma.vmem_to_hbm [thread:$0]  %s445, 128, %s8, [#allocation6]
    $region49: #{tpu_custom_call.1} parent=1 // pred_fallthru
      _
    // Predicated region
    $region50: #{tpu_custom_call.1} parent=1 // pred_check
      _
    $region51: #{tpu_custom_call.1} parent=1 // pred_check_branch
      %449 = sbr.rel (0) target = $region53
    $region52: #{tpu_custom_call.1} parent=1 // pred_region
      %450 = dma.done [#allocation6], 128
    $region53: #{tpu_custom_call.1} parent=1 // pred_fallthru
      _
    %451 = vsyncpa [#allocation5], 1
    %452 = vsyncpa [#allocation8], 1
    %453 = vsyncpa [#allocation11], 1
    %454 = vsyncpa [#allocation6], 1

</llo_original>
